<compile_context>
chip_gen: v7x
topology: tpu7x:2x2x1
jax: 0.10.0
libtpu: 0.0.40
codegen_flags: <defaults>
</compile_context>

<pallas_src>
import functools

import jax
import jax.numpy as jnp
from jax.experimental import pallas as pl
from jax.experimental.pallas import tpu as pltpu


def _round_up(x, m):
    return ((x + m - 1) // m) * m


def critic_kernel(obs_ref,                  # VMEM (tb, In)   f32 (tiled over batch)
                  w1_ref, b1_ref,           # VMEM (In, H) bf16, (1, H) f32 -- resident
                  w2_ref, b2_ref,           # VMEM (H, H)  bf16, (1, H) f32 -- resident
                  w3_ref, b3_ref,           # VMEM (H, Out)bf16, (1, Out) f32 -- resident
                  out_ref):                 # VMEM (tb, Out) f32
    # bf16 operands -> native bf16 MXU passes; f32 accumulation for numerics.
    x = obs_ref[...].astype(jnp.bfloat16)
    h1 = jnp.dot(x, w1_ref[...], preferred_element_type=jnp.float32) + b1_ref[...]
    h1 = jnp.maximum(h1, 0.0).astype(jnp.bfloat16)
    h2 = jnp.dot(h1, w2_ref[...], preferred_element_type=jnp.float32) + b2_ref[...]
    h2 = jnp.maximum(h2, 0.0).astype(jnp.bfloat16)
    v = jnp.dot(h2, w3_ref[...], preferred_element_type=jnp.float32) + b3_ref[...]
    out_ref[...] = v.astype(out_ref.dtype)


@functools.partial(jax.jit, static_argnames=("block_b",))
def critic_net_forward(obs, params, *, block_b=1024):
    """CriticNet forward: returns state_value of shape (B, output_size), f32.

    `params` must come from prepare_critic_params (weights stored (in, out),
    already bf16; biases f32 of shape (1, out)), so x @ W + b matches PyTorch's
    x @ W_pt.T + b.
    """
    w1, b1, w2, b2, w3, b3 = params
    B, In = obs.shape
    H = w1.shape[1]
    Out = w3.shape[1]

    # Batch tile: sublane-aligned, as large as possible (amortizes per-step
    # overhead), but with >=2 grid steps for big batches so v7x's two
    # TensorCores can split the "parallel" axis.
    tb = min(block_b, _round_up(B, 8))
    if B >= 512:
        tb = min(tb, _round_up(pl.cdiv(B, 2), 8))
    Bp = _round_up(B, tb)

    # Only touch obs if the batch actually needs padding.
    obs_p = obs if Bp == B else jnp.pad(obs, ((0, Bp - B), (0, 0)))

    resident = lambda i: (0, 0)   # same block every step -> weights stay in VMEM

    flops = 2 * Bp * (In * H + H * H + H * Out)
    bytes_accessed = (
        obs_p.size * obs_p.dtype.itemsize
        + sum(p.size * p.dtype.itemsize for p in params)
        + Bp * Out * 4
    )

    out_p = pl.pallas_call(
        critic_kernel,
        out_shape=jax.ShapeDtypeStruct((Bp, Out), jnp.float32),
        grid=(Bp // tb,),
        in_specs=[
            pl.BlockSpec((tb, In), lambda i: (i, 0)),   # obs: tiled over batch
            pl.BlockSpec((In, H), resident),            # w1 (bf16)
            pl.BlockSpec((1, H), resident),             # b1 (f32)
            pl.BlockSpec((H, H), resident),             # w2 (bf16)
            pl.BlockSpec((1, H), resident),             # b2 (f32)
            pl.BlockSpec((H, Out), resident),           # w3 (bf16)
            pl.BlockSpec((1, Out), resident),           # b3 (f32)
        ],
        out_specs=pl.BlockSpec((tb, Out), lambda i: (i, 0)),
        compiler_params=pltpu.CompilerParams(
            dimension_semantics=("parallel",)),         # v7x: split batch across TCs
        cost_estimate=pl.CostEstimate(
            flops=flops, transcendentals=0, bytes_accessed=bytes_accessed),
    )(obs_p, w1, b1, w2, b2, w3, b3)

    return out_p[:B]


def critic_net_reference(obs, params):
    """Pure-JAX reference using the same prepared params (weights upcast to f32)."""
    w1, b1, w2, b2, w3, b3 = params
    f32 = lambda a: a.astype(jnp.float32)
    h1 = jnp.maximum(obs @ f32(w1) + b1, 0.0)
    h2 = jnp.maximum(h1 @ f32(w2) + b2, 0.0)
    return h2 @ f32(w3) + b3


def init_critic_params(key, input_size, output_size, hidden_dim):
    """Init matching PyTorch nn.Linear default: U(-1/sqrt(fan_in), +1/sqrt(fan_in)).
    Weights stored as (in, out) (transposed vs. PyTorch) for x @ W."""
    dims = [(input_size, hidden_dim), (hidden_dim, hidden_dim), (hidden_dim, output_size)]
    params = []
    for fan_in, fan_out in dims:
        key, kw, kb = jax.random.split(key, 3)
        bound = 1.0 / (fan_in ** 0.5)
        w = jax.random.uniform(kw, (fan_in, fan_out), jnp.float32, -bound, bound)
        b = jax.random.uniform(kb, (fan_out,), jnp.float32, -bound, bound)
        params += [w, b]
    return tuple(params)


def prepare_critic_params(raw_params):
    """One-time setup (hoisted out of the forward path): cast weights to bf16
    and reshape biases to (1, out) rows for in-kernel broadcasting."""
    w1, b1, w2, b2, w3, b3 = raw_params
    return (
        w1.astype(jnp.bfloat16), b1.reshape(1, -1).astype(jnp.float32),
        w2.astype(jnp.bfloat16), b2.reshape(1, -1).astype(jnp.float32),
        w3.astype(jnp.bfloat16), b3.reshape(1, -1).astype(jnp.float32),
    )


if __name__ == "__main__":
    # Small shapes consistent with the module: obs (B, input_size), value (B, output_size).
    B, INPUT_SIZE, OUTPUT_SIZE, HIDDEN_DIM = 64, 16, 1, 32

    key = jax.random.PRNGKey(0)
    key, k_obs = jax.random.split(key)
    obs = jax.random.normal(k_obs, (B, INPUT_SIZE), dtype=jnp.float32)

    raw_params = init_critic_params(key, INPUT_SIZE, OUTPUT_SIZE, HIDDEN_DIM)
    params = prepare_critic_params(raw_params)     # done once, outside forward

    state_value = critic_net_forward(obs, params)
    jax.block_until_ready(state_value)

    ref = critic_net_reference(obs, params)

    assert state_value.shape == (B, OUTPUT_SIZE)
    assert state_value.dtype == jnp.float32
    assert bool(jnp.all(jnp.isfinite(state_value)))
    # bf16 MXU passes + bf16 weights: loose tolerance; a wrong transpose or
    # missing bias would blow well past this.
    assert bool(jnp.allclose(state_value, ref, rtol=2e-2, atol=2e-2))

    # Exercise the multi-step-grid / batch-padding path (still tiny shapes).
    B2 = 520
    key, k_obs2 = jax.random.split(key)
    obs2 = jax.random.normal(k_obs2, (B2, INPUT_SIZE), dtype=jnp.float32)
    v2 = critic_net_forward(obs2, params)
    jax.block_until_ready(v2)
    ref2 = critic_net_reference(obs2, params)
    assert v2.shape == (B2, OUTPUT_SIZE)
    assert bool(jnp.allclose(v2, ref2, rtol=2e-2, atol=2e-2))

    print("KERNEL_OK")
</pallas_src>

<mosaic_0001>
module attributes {stable_mosaic.version = 11 : i64} {
  func.func @critic_kernel(%arg0: i32, %arg1: memref<64x16xf32, #tpu.memory_space<vmem>>, %arg2: memref<16x32xbf16, #tpu.memory_space<vmem>>, %arg3: memref<1x32xf32, #tpu.memory_space<vmem>>, %arg4: memref<32x32xbf16, #tpu.memory_space<vmem>>, %arg5: memref<1x32xf32, #tpu.memory_space<vmem>>, %arg6: memref<32x1xbf16, #tpu.memory_space<vmem>>, %arg7: memref<1x1xf32, #tpu.memory_space<vmem>>, %arg8: memref<64x1xf32, #tpu.memory_space<vmem>>) attributes {dimension_semantics = [#tpu.dimension_semantics<parallel>], iteration_bounds = array<i64: 1>, scalar_prefetch = 0 : i64, scratch_operands = 0 : i64, tpu.core_type = #tpu.core_type<tc>, window_params = [{transform_indices = @transform_0, window_bounds = array<i64: 64, 16>}, {pipeline_mode = #tpu.pipeline_mode<synchronous>, transform_indices = @transform_1, window_bounds = array<i64: 16, 32>}, {pipeline_mode = #tpu.pipeline_mode<synchronous>, transform_indices = @transform_2, window_bounds = array<i64: 1, 32>}, {pipeline_mode = #tpu.pipeline_mode<synchronous>, transform_indices = @transform_3, window_bounds = array<i64: 32, 32>}, {pipeline_mode = #tpu.pipeline_mode<synchronous>, transform_indices = @transform_4, window_bounds = array<i64: 1, 32>}, {pipeline_mode = #tpu.pipeline_mode<synchronous>, transform_indices = @transform_5, window_bounds = array<i64: 32, 1>}, {pipeline_mode = #tpu.pipeline_mode<synchronous>, transform_indices = @transform_6, window_bounds = array<i64: 1, 1>}, {transform_indices = @transform_7, window_bounds = array<i64: 64, 1>}]} {
    %c0 = arith.constant 0 : index
    %c0_0 = arith.constant 0 : index
    %0 = vector.load %arg1[%c0, %c0_0] : memref<64x16xf32, #tpu.memory_space<vmem>>, vector<64x16xf32>
    %1 = arith.truncf %0 : vector<64x16xf32> to vector<64x16xbf16>
    %c0_1 = arith.constant 0 : index
    %c0_2 = arith.constant 0 : index
    %2 = vector.load %arg2[%c0_1, %c0_2] : memref<16x32xbf16, #tpu.memory_space<vmem>>, vector<16x32xbf16>
    %cst = arith.constant dense<0.000000e+00> : vector<64x32xf32>
    %3 = tpu.matmul %1, %2, %cst {dimension_numbers = #tpu.dot_dimension_numbers<[1], [0], [0], [1], [0, 0, 1, 1], [], []>} : vector<64x16xbf16>, vector<16x32xbf16>, vector<64x32xf32> -> vector<64x32xf32>
    %c0_3 = arith.constant 0 : index
    %c0_4 = arith.constant 0 : index
    %4 = vector.load %arg3[%c0_3, %c0_4] : memref<1x32xf32, #tpu.memory_space<vmem>>, vector<1x32xf32>
    %5 = vector.broadcast %4 : vector<1x32xf32> to vector<64x32xf32>
    %6 = arith.addf %3, %5 : vector<64x32xf32>
    %cst_5 = arith.constant 0.000000e+00 : f32
    %7 = vector.broadcast %cst_5 : f32 to vector<64x32xf32>
    %8 = arith.maximumf %6, %7 : vector<64x32xf32>
    %9 = arith.truncf %8 : vector<64x32xf32> to vector<64x32xbf16>
    %c0_6 = arith.constant 0 : index
    %c0_7 = arith.constant 0 : index
    %10 = vector.load %arg4[%c0_6, %c0_7] : memref<32x32xbf16, #tpu.memory_space<vmem>>, vector<32x32xbf16>
    %cst_8 = arith.constant dense<0.000000e+00> : vector<64x32xf32>
    %11 = tpu.matmul %9, %10, %cst_8 {dimension_numbers = #tpu.dot_dimension_numbers<[1], [0], [0], [1], [0, 0, 1, 1], [], []>} : vector<64x32xbf16>, vector<32x32xbf16>, vector<64x32xf32> -> vector<64x32xf32>
    %c0_9 = arith.constant 0 : index
    %c0_10 = arith.constant 0 : index
    %12 = vector.load %arg5[%c0_9, %c0_10] : memref<1x32xf32, #tpu.memory_space<vmem>>, vector<1x32xf32>
    %13 = vector.broadcast %12 : vector<1x32xf32> to vector<64x32xf32>
    %14 = arith.addf %11, %13 : vector<64x32xf32>
    %cst_11 = arith.constant 0.000000e+00 : f32
    %15 = vector.broadcast %cst_11 : f32 to vector<64x32xf32>
    %16 = arith.maximumf %14, %15 : vector<64x32xf32>
    %17 = arith.truncf %16 : vector<64x32xf32> to vector<64x32xbf16>
    %c0_12 = arith.constant 0 : index
    %c0_13 = arith.constant 0 : index
    %18 = vector.load %arg6[%c0_12, %c0_13] : memref<32x1xbf16, #tpu.memory_space<vmem>>, vector<32x1xbf16>
    %cst_14 = arith.constant dense<0.000000e+00> : vector<64x1xf32>
    %19 = tpu.matmul %17, %18, %cst_14 {dimension_numbers = #tpu.dot_dimension_numbers<[1], [0], [0], [1], [0, 0, 1, 1], [], []>} : vector<64x32xbf16>, vector<32x1xbf16>, vector<64x1xf32> -> vector<64x1xf32>
    %c0_15 = arith.constant 0 : index
    %c0_16 = arith.constant 0 : index
    %20 = vector.load %arg7[%c0_15, %c0_16] : memref<1x1xf32, #tpu.memory_space<vmem>>, vector<1x1xf32>
    %21 = vector.broadcast %20 : vector<1x1xf32> to vector<64x1xf32>
    %22 = arith.addf %19, %21 : vector<64x1xf32>
    %c0_17 = arith.constant 0 : index
    %c0_18 = arith.constant 0 : index
    %23 = vector.load %arg8[%c0_17, %c0_18] : memref<64x1xf32, #tpu.memory_space<vmem>>, vector<64x1xf32>
    tpu.vector_store %arg8[%c0_17, %c0_18], %22 {strides = array<i32>} : memref<64x1xf32, #tpu.memory_space<vmem>>, vector<64x1xf32>,
    return
  }
  func.func @transform_0(%arg0: i32) -> (i32, i32) {
    %c0_i32 = arith.constant 0 : i32
    %c0_i32_0 = arith.constant 0 : i32
    return %arg0, %c0_i32 : i32, i32
  }
  func.func @transform_1(%arg0: i32) -> (i32, i32) {
    %c0_i32 = arith.constant 0 : i32
    %c0_i32_0 = arith.constant 0 : i32
    %c0_i32_1 = arith.constant 0 : i32
    return %c0_i32, %c0_i32_0 : i32, i32
  }
  func.func @transform_2(%arg0: i32) -> (i32, i32) {
    %c0_i32 = arith.constant 0 : i32
    %c0_i32_0 = arith.constant 0 : i32
    %c0_i32_1 = arith.constant 0 : i32
    return %c0_i32, %c0_i32_0 : i32, i32
  }
  func.func @transform_3(%arg0: i32) -> (i32, i32) {
    %c0_i32 = arith.constant 0 : i32
    %c0_i32_0 = arith.constant 0 : i32
    %c0_i32_1 = arith.constant 0 : i32
    return %c0_i32, %c0_i32_0 : i32, i32
  }
  func.func @transform_4(%arg0: i32) -> (i32, i32) {
    %c0_i32 = arith.constant 0 : i32
    %c0_i32_0 = arith.constant 0 : i32
    %c0_i32_1 = arith.constant 0 : i32
    return %c0_i32, %c0_i32_0 : i32, i32
  }
  func.func @transform_5(%arg0: i32) -> (i32, i32) {
    %c0_i32 = arith.constant 0 : i32
    %c0_i32_0 = arith.constant 0 : i32
    %c0_i32_1 = arith.constant 0 : i32
    return %c0_i32, %c0_i32_0 : i32, i32
  }
  func.func @transform_6(%arg0: i32) -> (i32, i32) {
    %c0_i32 = arith.constant 0 : i32
    %c0_i32_0 = arith.constant 0 : i32
    %c0_i32_1 = arith.constant 0 : i32
    return %c0_i32, %c0_i32_0 : i32, i32
  }
  func.func @transform_7(%arg0: i32) -> (i32, i32) {
    %c0_i32 = arith.constant 0 : i32
    %c0_i32_0 = arith.constant 0 : i32
    return %arg0, %c0_i32 : i32, i32
  }
}

</mosaic_0001>

<llo_original>
// kernel: critic_net_forward.1
$region0: #{critic_net_forward.1}
  #allocation0 [shape = 'u32[]', space=smem, size = 0x4, offset = 0x4, fixed_abs, tag = 'smem constant byte address 0x4 - core index']
  #allocation1 [shape = 'u32[144,128]{1,0:T(1,128)}', space=vmem, size = 0x12000, scoped, tag = 'internal scratch']
  #allocation2 [shape = 'f32[1,1]{1,0:T(1,128)S(1)}', space=vmem, size = 0x200, scoped, tag = 'scoped memory for critic_net_forward.1']
  %s0 = inlined_call_operand.vmem [shape: f32[64,16], index: 0, kind: input, shape index: {}]
  %s1 = inlined_call_operand.vmem [shape: bf16[16,32], index: 1, kind: input, shape index: {}]
  %s2 = inlined_call_operand.vmem [shape: f32[1,32], index: 2, kind: input, shape index: {}]
  %s3 = inlined_call_operand.vmem [shape: bf16[32,32], index: 3, kind: input, shape index: {}]
  %s4 = inlined_call_operand.vmem [shape: f32[1,32], index: 4, kind: input, shape index: {}]
  %s5 = inlined_call_operand.vmem [shape: bf16[32,1], index: 5, kind: input, shape index: {}]
  %s6 = inlined_call_operand.<no memory space> [shape: f32[1,1], index: 6, kind: input, shape index: {}]
  %s7 = inlined_call_operand.vmem [shape: f32[64,1], index: 7, kind: output, shape index: {}]
  %s8 = sld [smem:[#allocation0]]
  $region38: #{critic_net_forward.1} parent=0
    _
  %s10 = ssub.s32 1, %s8
  %s11 = scalar_select 0, %s10, %s8
  %v12 = vstv %s6
  %13 = vst [vmem:[#allocation2] sm:$0x1] %v12
  // Predicated region
  $region2: #{critic_net_forward.1} parent=0 // pred_check
    _
  $region3: #{critic_net_forward.1} parent=0 // pred_check_branch
    %15 = sbr.rel (0) target = $region5
  $region4: #{critic_net_forward.1} parent=0 // pred_region
    _
  $region5: #{critic_net_forward.1} parent=0 // pred_fallthru
    _
  // Predicated region
  $region6: #{critic_net_forward.1} parent=0 // pred_check
    _
  $region7: #{critic_net_forward.1} parent=0 // pred_check_branch
    %17 = sbr.rel (0) target = $region9
  $region8: #{critic_net_forward.1} parent=0 // pred_region
    _
  $region9: #{critic_net_forward.1} parent=0 // pred_fallthru
    _
  // Predicated region
  $region10: #{critic_net_forward.1} parent=0 // pred_check
    _
  $region11: #{critic_net_forward.1} parent=0 // pred_check_branch
    %19 = sbr.rel (0) target = $region13
  $region12: #{critic_net_forward.1} parent=0 // pred_region
    _
  $region13: #{critic_net_forward.1} parent=0 // pred_fallthru
    _
  // Predicated region
  $region14: #{critic_net_forward.1} parent=0 // pred_check
    _
  $region15: #{critic_net_forward.1} parent=0 // pred_check_branch
    %21 = sbr.rel (0) target = $region17
  $region16: #{critic_net_forward.1} parent=0 // pred_region
    _
  $region17: #{critic_net_forward.1} parent=0 // pred_fallthru
    _
  // Predicated region
  $region18: #{critic_net_forward.1} parent=0 // pred_check
    _
  $region19: #{critic_net_forward.1} parent=0 // pred_check_branch
    %23 = sbr.rel (0) target = $region21
  $region20: #{critic_net_forward.1} parent=0 // pred_region
    _
  $region21: #{critic_net_forward.1} parent=0 // pred_fallthru
    _
  // Predicated region
  $region22: #{critic_net_forward.1} parent=0 // pred_check
    _
  $region23: #{critic_net_forward.1} parent=0 // pred_check_branch
    %25 = sbr.rel (0) target = $region25
  $region24: #{critic_net_forward.1} parent=0 // pred_region
    _
  $region25: #{critic_net_forward.1} parent=0 // pred_fallthru
    _
  // Predicated region
  $region26: #{critic_net_forward.1} parent=0 // pred_check
    _
  $region27: #{critic_net_forward.1} parent=0 // pred_check_branch
    %27 = sbr.rel (0) target = $region29
  $region28: #{critic_net_forward.1} parent=0 // pred_region
    _
  $region29: #{critic_net_forward.1} parent=0 // pred_fallthru
    _
  %v29 = vld [vmem:[%s0] sm:$0xff]
  %v30 = vld [vmem:[%s0 + $0x8] sm:$0xff]
  %v31 = vld [vmem:[%s0 + $0x10] sm:$0xff]
  %v32 = vld [vmem:[%s0 + $0x18] sm:$0xff]
  %v33 = vld [vmem:[%s0 + $0x20] sm:$0xff]
  %v34 = vld [vmem:[%s0 + $0x28] sm:$0xff]
  %v35 = vld [vmem:[%s0 + $0x30] sm:$0xff]
  %v36 = vld [vmem:[%s0 + $0x38] sm:$0xff]
  %v37 = vpack.c.bf16 %v30, %v29
  %v38 = vpack.c.bf16 %v32, %v31
  %v39 = vpack.c.bf16 %v34, %v33
  %v40 = vpack.c.bf16 %v36, %v35
  %v41 = vld [vmem:[%s1] sm:$0xf]
  %v42 = vld [vmem:[%s1 + $0x4] sm:$0xf]
  %v43 = vld [vmem:[%s2] sm:$0x1]
  %v45 = vlaneseq
  %v46 = vshrl.u32 %v45, 7
  %v47 = vsub.s32 0, %v46
  %v48 = vrot.slane %v43, %v47
  %v52 = vunpack.c.l.b16 %v41
  %v53 = vunpack.c.l.b16 %v42
  %v54 = vpack.c.b16 %v53, %v52
  %vm56 = vcmask 130048
  %v58 = vsel %vm56, %v37, 0
  %v61 = vsel %vm56, %v38, 0
  %v64 = vsel %vm56, %v39, 0
  %v67 = vsel %vm56, %v40, 0
  %69 = vmatprep.subr.bf16.mxu0 0
  %70 = vmatpush1.bf16.msra.mxu0 %v54
  %71 = vmatprep.subr.bf16.mxu0 0
  %72 = vmatpush1.bf16.msra.mxu0 0
  %73 = vmatprep.subr.bf16.mxu0 0
  %74 = vmatpush1.bf16.msra.mxu0 0
  %75 = vmatprep.subr.bf16.mxu0 0
  %76 = vmatpush1.bf16.msra.mxu0 0
  %77 = vmatprep.subr.bf16.mxu0 0
  %78 = vmatpush1.bf16.msra.mxu0 0
  %79 = vmatprep.subr.bf16.mxu0 0
  %80 = vmatpush1.bf16.msra.mxu0 0
  %81 = vmatprep.subr.bf16.mxu0 0
  %82 = vmatpush1.bf16.msra.mxu0 0
  %83 = vmatprep.subr.bf16.mxu0 0
  %84 = vmatpush1.bf16.msra.mxu0 0
  %85 = vmatprep.subr.bf16.mxu0 0
  %86 = vmatpush1.bf16.msra.mxu0 0
  %87 = vmatprep.subr.bf16.mxu0 0
  %88 = vmatpush1.bf16.msra.mxu0 0
  %89 = vmatprep.subr.bf16.mxu0 0
  %90 = vmatpush1.bf16.msra.mxu0 0
  %91 = vmatprep.subr.bf16.mxu0 0
  %92 = vmatpush1.bf16.msra.mxu0 0
  %93 = vmatprep.subr.bf16.mxu0 0
  %94 = vmatpush1.bf16.msra.mxu0 0
  %95 = vmatprep.subr.bf16.mxu0 0
  %96 = vmatpush1.bf16.msra.mxu0 0
  %97 = vmatprep.subr.bf16.mxu0 0
  %98 = vmatpush1.bf16.msra.mxu0 0
  %99 = vmatprep.subr.bf16.mxu0 0
  %100 = vmatpush1.bf16.msra.mxu0 0
  %101 = vmatprep.mubr.bf16.mxu0 0
  %102 = vmatmul.mubr.bf16.gmra.mrb[0].mxu0 %v58
  %v103 = vpop.f32.mrb[0].mxu0
  %v104 = vadd.f32 %v48, %v103
  %v105 = vpop.f32.mrb[0].mxu0
  %v106 = vpop.f32.mrb[0].mxu0
  %v107 = vadd.f32 %v48, %v106
  %v108 = vpop.f32.mrb[0].mxu0
  %109 = vmatprep.mubr.bf16.mxu0 0
  %110 = vmatmul.mubr.bf16.gmra.mrb[0].mxu0 %v61
  %v111 = vpop.f32.mrb[0].mxu0
  %v112 = vadd.f32 %v48, %v111
  %v113 = vpop.f32.mrb[0].mxu0
  %v114 = vpop.f32.mrb[0].mxu0
  %v115 = vadd.f32 %v48, %v114
  %v116 = vpop.f32.mrb[0].mxu0
  %117 = vmatprep.mubr.bf16.mxu0 0
  %118 = vmatmul.mubr.bf16.gmra.mrb[0].mxu0 %v64
  %v119 = vpop.f32.mrb[0].mxu0
  %v120 = vadd.f32 %v48, %v119
  %v121 = vpop.f32.mrb[0].mxu0
  %v122 = vpop.f32.mrb[0].mxu0
  %v123 = vadd.f32 %v48, %v122
  %v124 = vpop.f32.mrb[0].mxu0
  %125 = vmatprep.mubr.bf16.mxu0 0
  %126 = vmatmul.mubr.bf16.gmra.mrb[0].mxu0 %v67
  %v127 = vpop.f32.mrb[0].mxu0
  %v128 = vadd.f32 %v48, %v127
  %v129 = vpop.f32.mrb[0].mxu0
  %v130 = vpop.f32.mrb[0].mxu0
  %v131 = vadd.f32 %v48, %v130
  %v132 = vpop.f32.mrb[0].mxu0
  %133 = vdwg.mxu0
  %v134 = vmax.f32 %v104, 0.0
  %v135 = vmax.f32 %v107, 0.0
  %v136 = vmax.f32 %v112, 0.0
  %v137 = vmax.f32 %v115, 0.0
  %v138 = vmax.f32 %v120, 0.0
  %v139 = vmax.f32 %v123, 0.0
  %v140 = vmax.f32 %v128, 0.0
  %v141 = vmax.f32 %v131, 0.0
  %v142 = vpack.c.bf16 %v135, %v134
  %v143 = vpack.c.bf16 %v137, %v136
  %v144 = vpack.c.bf16 %v139, %v138
  %v145 = vpack.c.bf16 %v141, %v140
  %v146 = vld [vmem:[%s3] sm:$0xf]
  %v147 = vld [vmem:[%s3 + $0x4] sm:$0xf]
  %v148 = vld [vmem:[%s3 + $0x8] sm:$0xf]
  %v149 = vld [vmem:[%s3 + $0xc] sm:$0xf]
  %v150 = vld [vmem:[%s4] sm:$0x1]
  %v152 = vlaneseq
  %v153 = vshrl.u32 %v152, 7
  %v154 = vsub.s32 0, %v153
  %v155 = vrot.slane %v150, %v154
  %v161 = vunpack.c.l.b16 %v146
  %v162 = vunpack.c.l.b16 %v147
  %v163 = vunpack.c.l.b16 %v148
  %v164 = vunpack.c.l.b16 %v149
  %v165 = vpack.c.b16 %v162, %v161
  %v166 = vpack.c.b16 %v164, %v163
  %vm169 = vcmask 261120
  %v171 = vsel %vm169, %v142, 0
  %v174 = vsel %vm169, %v143, 0
  %v177 = vsel %vm169, %v144, 0
  %v180 = vsel %vm169, %v145, 0
  %182 = vmatprep.subr.bf16.mxu0 0
  %183 = vmatpush1.bf16.msra.mxu0 %v165
  %184 = vmatprep.subr.bf16.mxu0 0
  %185 = vmatpush1.bf16.msra.mxu0 %v166
  %186 = vmatprep.subr.bf16.mxu0 0
  %187 = vmatpush1.bf16.msra.mxu0 0
  %188 = vmatprep.subr.bf16.mxu0 0
  %189 = vmatpush1.bf16.msra.mxu0 0
  %190 = vmatprep.subr.bf16.mxu0 0
  %191 = vmatpush1.bf16.msra.mxu0 0
  %192 = vmatprep.subr.bf16.mxu0 0
  %193 = vmatpush1.bf16.msra.mxu0 0
  %194 = vmatprep.subr.bf16.mxu0 0
  %195 = vmatpush1.bf16.msra.mxu0 0
  %196 = vmatprep.subr.bf16.mxu0 0
  %197 = vmatpush1.bf16.msra.mxu0 0
  %198 = vmatprep.subr.bf16.mxu0 0
  %199 = vmatpush1.bf16.msra.mxu0 0
  %200 = vmatprep.subr.bf16.mxu0 0
  %201 = vmatpush1.bf16.msra.mxu0 0
  %202 = vmatprep.subr.bf16.mxu0 0
  %203 = vmatpush1.bf16.msra.mxu0 0
  %204 = vmatprep.subr.bf16.mxu0 0
  %205 = vmatpush1.bf16.msra.mxu0 0
  %206 = vmatprep.subr.bf16.mxu0 0
  %207 = vmatpush1.bf16.msra.mxu0 0
  %208 = vmatprep.subr.bf16.mxu0 0
  %209 = vmatpush1.bf16.msra.mxu0 0
  %210 = vmatprep.subr.bf16.mxu0 0
  %211 = vmatpush1.bf16.msra.mxu0 0
  %212 = vmatprep.subr.bf16.mxu0 0
  %213 = vmatpush1.bf16.msra.mxu0 0
  %214 = vmatprep.mubr.bf16.mxu0 0
  %215 = vmatmul.mubr.bf16.gmra.mrb[0].mxu0 %v171
  %v216 = vpop.f32.mrb[0].mxu0
  %v217 = vadd.f32 %v155, %v216
  %v218 = vpop.f32.mrb[0].mxu0
  %v219 = vpop.f32.mrb[0].mxu0
  %v220 = vadd.f32 %v155, %v219
  %v221 = vpop.f32.mrb[0].mxu0
  %222 = vmatprep.mubr.bf16.mxu0 0
  %223 = vmatmul.mubr.bf16.gmra.mrb[0].mxu0 %v174
  %v224 = vpop.f32.mrb[0].mxu0
  %v225 = vadd.f32 %v155, %v224
  %v226 = vpop.f32.mrb[0].mxu0
  %v227 = vpop.f32.mrb[0].mxu0
  %v228 = vadd.f32 %v155, %v227
  %v229 = vpop.f32.mrb[0].mxu0
  %230 = vmatprep.mubr.bf16.mxu0 0
  %231 = vmatmul.mubr.bf16.gmra.mrb[0].mxu0 %v177
  %v232 = vpop.f32.mrb[0].mxu0
  %v233 = vadd.f32 %v155, %v232
  %v234 = vpop.f32.mrb[0].mxu0
  %v235 = vpop.f32.mrb[0].mxu0
  %v236 = vadd.f32 %v155, %v235
  %v237 = vpop.f32.mrb[0].mxu0
  %238 = vmatprep.mubr.bf16.mxu0 0
  %239 = vmatmul.mubr.bf16.gmra.mrb[0].mxu0 %v180
  %v240 = vpop.f32.mrb[0].mxu0
  %v241 = vadd.f32 %v155, %v240
  %v242 = vpop.f32.mrb[0].mxu0
  %v243 = vpop.f32.mrb[0].mxu0
  %v244 = vadd.f32 %v155, %v243
  %v245 = vpop.f32.mrb[0].mxu0
  %246 = vdwg.mxu0
  %v247 = vmax.f32 %v217, 0.0
  %v248 = vmax.f32 %v220, 0.0
  %v249 = vmax.f32 %v225, 0.0
  %v250 = vmax.f32 %v228, 0.0
  %v251 = vmax.f32 %v233, 0.0
  %v252 = vmax.f32 %v236, 0.0
  %v253 = vmax.f32 %v241, 0.0
  %v254 = vmax.f32 %v244, 0.0
  %v255 = vpack.c.bf16 %v248, %v247
  %v256 = vpack.c.bf16 %v250, %v249
  %v257 = vpack.c.bf16 %v252, %v251
  %v258 = vpack.c.bf16 %v254, %v253
  %v259 = vld [vmem:[%s5] sm:$0xf]
  %v260 = vld [vmem:[%s5 + $0x4] sm:$0xf]
  %v261 = vld [vmem:[%s5 + $0x8] sm:$0xf]
  %v262 = vld [vmem:[%s5 + $0xc] sm:$0xf]
  %v263 = vld [vmem:[#allocation2] sm:$0x1]
  %v265 = vlaneseq
  %v266 = vshrl.u32 %v265, 7
  %v267 = vsub.s32 0, %v266
  %v268 = vrot.slane %v263, %v267
  %v274 = vunpack.c.l.b16 %v259
  %v275 = vunpack.c.l.b16 %v260
  %v276 = vunpack.c.l.b16 %v261
  %v277 = vunpack.c.l.b16 %v262
  %v278 = vpack.c.b16 %v275, %v274
  %v279 = vpack.c.b16 %v277, %v276
  %v283 = vsel %vm169, %v255, 0
  %v286 = vsel %vm169, %v256, 0
  %v289 = vsel %vm169, %v257, 0
  %v292 = vsel %vm169, %v258, 0
  %294 = vmatprep.subr.bf16.mxu0 0
  %295 = vmatpush1.bf16.msra.mxu0 %v278
  %296 = vmatprep.subr.bf16.mxu0 0
  %297 = vmatpush1.bf16.msra.mxu0 %v279
  %298 = vmatprep.subr.bf16.mxu0 0
  %299 = vmatpush1.bf16.msra.mxu0 0
  %300 = vmatprep.subr.bf16.mxu0 0
  %301 = vmatpush1.bf16.msra.mxu0 0
  %302 = vmatprep.subr.bf16.mxu0 0
  %303 = vmatpush1.bf16.msra.mxu0 0
  %304 = vmatprep.subr.bf16.mxu0 0
  %305 = vmatpush1.bf16.msra.mxu0 0
  %306 = vmatprep.subr.bf16.mxu0 0
  %307 = vmatpush1.bf16.msra.mxu0 0
  %308 = vmatprep.subr.bf16.mxu0 0
  %309 = vmatpush1.bf16.msra.mxu0 0
  %310 = vmatprep.subr.bf16.mxu0 0
  %311 = vmatpush1.bf16.msra.mxu0 0
  %312 = vmatprep.subr.bf16.mxu0 0
  %313 = vmatpush1.bf16.msra.mxu0 0
  %314 = vmatprep.subr.bf16.mxu0 0
  %315 = vmatpush1.bf16.msra.mxu0 0
  %316 = vmatprep.subr.bf16.mxu0 0
  %317 = vmatpush1.bf16.msra.mxu0 0
  %318 = vmatprep.subr.bf16.mxu0 0
  %319 = vmatpush1.bf16.msra.mxu0 0
  %320 = vmatprep.subr.bf16.mxu0 0
  %321 = vmatpush1.bf16.msra.mxu0 0
  %322 = vmatprep.subr.bf16.mxu0 0
  %323 = vmatpush1.bf16.msra.mxu0 0
  %324 = vmatprep.subr.bf16.mxu0 0
  %325 = vmatpush1.bf16.msra.mxu0 0
  %326 = vmatprep.mubr.bf16.mxu0 0
  %327 = vmatmul.mubr.bf16.gmra.mrb[0].mxu0 %v283
  %v328 = vpop.f32.mrb[0].mxu0
  %v329 = vadd.f32 %v268, %v328
  %v330 = vpop.f32.mrb[0].mxu0
  %v331 = vpop.f32.mrb[0].mxu0
  %v332 = vadd.f32 %v268, %v331
  %v333 = vpop.f32.mrb[0].mxu0
  %334 = vmatprep.mubr.bf16.mxu0 0
  %335 = vmatmul.mubr.bf16.gmra.mrb[0].mxu0 %v286
  %v336 = vpop.f32.mrb[0].mxu0
  %v337 = vadd.f32 %v268, %v336
  %v338 = vpop.f32.mrb[0].mxu0
  %v339 = vpop.f32.mrb[0].mxu0
  %v340 = vadd.f32 %v268, %v339
  %v341 = vpop.f32.mrb[0].mxu0
  %342 = vmatprep.mubr.bf16.mxu0 0
  %343 = vmatmul.mubr.bf16.gmra.mrb[0].mxu0 %v289
  %v344 = vpop.f32.mrb[0].mxu0
  %v345 = vadd.f32 %v268, %v344
  %v346 = vpop.f32.mrb[0].mxu0
  %v347 = vpop.f32.mrb[0].mxu0
  %v348 = vadd.f32 %v268, %v347
  %v349 = vpop.f32.mrb[0].mxu0
  %350 = vmatprep.mubr.bf16.mxu0 0
  %351 = vmatmul.mubr.bf16.gmra.mrb[0].mxu0 %v292
  %v352 = vpop.f32.mrb[0].mxu0
  %v353 = vadd.f32 %v268, %v352
  %v354 = vpop.f32.mrb[0].mxu0
  %v355 = vpop.f32.mrb[0].mxu0
  %v356 = vadd.f32 %v268, %v355
  %v357 = vpop.f32.mrb[0].mxu0
  %358 = vdwg.mxu0
  %vm359 = vcmask 7168
  %360 = vst.msk [vmem:[%s7] sm:$0xff] %vm359, %v329
  %361 = vst.msk [vmem:[%s7 + $0x8] sm:$0xff] %vm359, %v332
  %362 = vst.msk [vmem:[%s7 + $0x10] sm:$0xff] %vm359, %v337
  %363 = vst.msk [vmem:[%s7 + $0x18] sm:$0xff] %vm359, %v340
  %364 = vst.msk [vmem:[%s7 + $0x20] sm:$0xff] %vm359, %v345
  %365 = vst.msk [vmem:[%s7 + $0x28] sm:$0xff] %vm359, %v348
  %366 = vst.msk [vmem:[%s7 + $0x30] sm:$0xff] %vm359, %v353
  %367 = vst.msk [vmem:[%s7 + $0x38] sm:$0xff] %vm359, %v356
  // Predicated region
  $region30: #{critic_net_forward.1} parent=0 // pred_check
    _
  $region31: #{critic_net_forward.1} parent=0 // pred_check_branch
    %369 = sbr.rel (0) target = $region33
  $region32: #{critic_net_forward.1} parent=0 // pred_region
    _
  $region33: #{critic_net_forward.1} parent=0 // pred_fallthru
    _
  // Predicated region
  $region34: #{critic_net_forward.1} parent=0 // pred_check
    _
  $region35: #{critic_net_forward.1} parent=0 // pred_check_branch
    %371 = sbr.rel (0) target = $region37
  $region36: #{critic_net_forward.1} parent=0 // pred_region
    _
  $region37: #{critic_net_forward.1} parent=0 // pred_fallthru
    _

</llo_original>
